<compile_context>
chip_gen: v6e
topology: v6e:2x2x1
jax: 0.10.0
libtpu: 0.0.40
codegen_flags: <defaults>
</compile_context>

<pallas_src>
import functools
import math

import jax
import jax.numpy as jnp
from jax.experimental import pallas as pl
from jax.experimental.pallas import tpu as pltpu


def _round_up(x, m):
    return ((x + m - 1) // m) * m


# ----------------------------------------------------------------------------
# Pallas kernel
# ----------------------------------------------------------------------------

def _gfp_kernel(t_ref, wm_ref, ph_ref, o_ref, *, k):
    # t_ref : (tb, k)      k packed time values per output row
    # wm_ref: (k, Wtot)    block-diagonal per-segment 2*pi*W (sin & cos halves)
    # ph_ref: (1, Wtot)    0 on sin lanes, pi/2 on cos lanes
    # o_ref : (tb, Wtot)   final packed [sin|cos | sin|cos | ...] layout
    proj = ph_ref[...] + t_ref[:, 0:1] * wm_ref[0:1, :]
    for s in range(1, k):                       # tiny static unroll (k <= 16)
        proj = proj + t_ref[:, s:s + 1] * wm_ref[s:s + 1, :]
    o_ref[...] = jnp.sin(proj).astype(o_ref.dtype)


# ----------------------------------------------------------------------------
# Wrapper
# ----------------------------------------------------------------------------

def gaussian_fourier_projection(t, W, *, out_dtype=jnp.float32, tb_max=512):
    """Pallas TPU implementation of GaussianFourierProjection.forward.

    t: (B,) time steps.  W: (embed_dim//2,) fixed random frequencies.
    Returns (B, embed_dim) = concat([sin(t*W*2pi), cos(t*W*2pi)], axis=-1).
    Compute is f32; `out_dtype=jnp.bfloat16` halves the HBM write traffic.
    """
    B = int(t.shape[0])
    half = int(W.shape[0])
    E = 2 * half                                       # embed_dim

    # Packing factor: k consecutive batch rows per output row so the stored
    # row width k*E is a multiple of 128 lanes (unmasked, dense vst).
    k = 1 if E % 128 == 0 else 128 // math.gcd(E, 128)
    if k > 16:
        # TODO(synk): degenerate tiny embed_dim; fall back to narrow (masked) rows.
        k = 1
    Wtot = k * E

    # --- tiny constant tables, built once in the wrapper ---------------------
    w2pi = W.astype(jnp.float32) * (2.0 * math.pi)              # (half,)
    w_row = jnp.concatenate([w2pi, w2pi])                       # (E,) sin|cos freqs
    wm = (jnp.eye(k, dtype=jnp.float32)[:, :, None]
          * w_row[None, None, :]).reshape(k, Wtot)              # block-diagonal
    ph_seg = jnp.concatenate([jnp.zeros((half,), jnp.float32),
                              jnp.full((half,), 0.5 * math.pi, jnp.float32)])
    ph = jnp.tile(ph_seg, k).reshape(1, Wtot)

    # --- row tiling -----------------------------------------------------------
    r_raw = -(-B // k)                           # packed rows actually needed
    if r_raw <= 16:
        tb = r_raw                               # single full-extent block
        grid_n = 1
    else:
        # ~2 MiB per output buffer -> <= 4 MiB double-buffered (v5e-safe).
        vmem_rows = max(8, ((2 * 1024 * 1024) // (Wtot * 4)) // 8 * 8)
        tb = min(tb_max, vmem_rows, _round_up(-(-r_raw // 2), 8))
        grid_n = -(-r_raw // tb)
        if grid_n % 2:                           # even grid -> v7x megacore split
            grid_n += 1
    R = grid_n * tb
    Bp = R * k

    t_pad = jnp.zeros((Bp,), jnp.float32).at[:B].set(t.astype(jnp.float32))
    t_pad = t_pad.reshape(R, k)

    out_bytes = R * Wtot * jnp.dtype(out_dtype).itemsize
    cost = pl.CostEstimate(
        flops=2 * k * R * Wtot,
        transcendentals=R * Wtot,
        bytes_accessed=out_bytes + Bp * 4 + (k + 1) * Wtot * 4,
    )

    out = pl.pallas_call(
        functools.partial(_gfp_kernel, k=k),
        out_shape=jax.ShapeDtypeStruct((R, Wtot), out_dtype),
        grid=(grid_n,),
        in_specs=[
            pl.BlockSpec((tb, k), lambda i: (i, 0)),        # packed t rows
            pl.BlockSpec((k, Wtot), lambda i: (0, 0)),      # resident freq table
            pl.BlockSpec((1, Wtot), lambda i: (0, 0)),      # resident phase row
        ],
        out_specs=pl.BlockSpec((tb, Wtot), lambda i: (i, 0)),
        compiler_params=pltpu.CompilerParams(
            dimension_semantics=("parallel",)),
        cost_estimate=cost,
    )(t_pad, wm, ph)

    # The packed rows are a contiguous row-major view of the final (B, E)
    # layout: a free reshape + cheap prefix slice, no concat / reshuffle.
    return out.reshape(Bp, E)[:B]


# ----------------------------------------------------------------------------
# Reference + demo
# ----------------------------------------------------------------------------

def _reference(t, W):
    proj = t[:, None] * W[None, :] * (2.0 * math.pi)
    return jnp.concatenate([jnp.sin(proj), jnp.cos(proj)], axis=-1)


if __name__ == "__main__":
    key = jax.random.PRNGKey(0)
    fwd = jax.jit(gaussian_fourier_projection)

    # (embed_dim, B): packed path (k=4, single block) and aligned path (k=1, grid=2).
    for embed_dim, B in [(32, 8), (256, 40)]:
        kw, kt, key = jax.random.split(key, 3)
        # nn.Parameter(torch.randn(embed_dim // 2) * 30.0), requires_grad=False
        W = 30.0 * jax.random.normal(kw, (embed_dim // 2,), dtype=jnp.float32)
        t = jax.random.uniform(kt, (B,), minval=0.0, maxval=1.0, dtype=jnp.float32)

        out = fwd(t, W)
        jax.block_until_ready(out)

        ref = _reference(t, W)
        assert out.shape == (B, embed_dim) and out.dtype == jnp.float32
        err = float(jnp.max(jnp.abs(out - ref)))
        assert err < 2e-3, f"mismatch vs reference (embed_dim={embed_dim}): {err}"

    print("KERNEL_OK")
</pallas_src>

<mosaic_0001>
module attributes {stable_mosaic.version = 11 : i64} {
  func.func @_gfp_kernel(%arg0: i32, %arg1: memref<2x4xf32, #tpu.memory_space<vmem>>, %arg2: memref<4x128xf32, #tpu.memory_space<vmem>>, %arg3: memref<1x128xf32, #tpu.memory_space<vmem>>, %arg4: memref<2x128xf32, #tpu.memory_space<vmem>>) attributes {dimension_semantics = [#tpu.dimension_semantics<parallel>], iteration_bounds = array<i64: 1>, scalar_prefetch = 0 : i64, scratch_operands = 0 : i64, tpu.core_type = #tpu.core_type<tc>, window_params = [{transform_indices = @transform_0, window_bounds = array<i64: 2, 4>}, {pipeline_mode = #tpu.pipeline_mode<synchronous>, transform_indices = @transform_1, window_bounds = array<i64: 4, 128>}, {pipeline_mode = #tpu.pipeline_mode<synchronous>, transform_indices = @transform_2, window_bounds = array<i64: 1, 128>}, {transform_indices = @transform_3, window_bounds = array<i64: 2, 128>}]} {
    %c0 = arith.constant 0 : index
    %c0_0 = arith.constant 0 : index
    %0 = vector.load %arg3[%c0, %c0_0] : memref<1x128xf32, #tpu.memory_space<vmem>>, vector<1x128xf32>
    %c0_1 = arith.constant 0 : index
    %c0_2 = arith.constant 0 : index
    %1 = vector.load %arg1[%c0_1, %c0_2] : memref<2x4xf32, #tpu.memory_space<vmem>>, vector<2x1xf32>
    %c0_3 = arith.constant 0 : index
    %c0_4 = arith.constant 0 : index
    %2 = vector.load %arg2[%c0_3, %c0_4] : memref<4x128xf32, #tpu.memory_space<vmem>>, vector<1x128xf32>
    %3 = vector.broadcast %1 : vector<2x1xf32> to vector<2x128xf32>
    %4 = vector.broadcast %2 : vector<1x128xf32> to vector<2x128xf32>
    %5 = arith.mulf %3, %4 : vector<2x128xf32>
    %6 = vector.broadcast %0 : vector<1x128xf32> to vector<2x128xf32>
    %7 = arith.addf %6, %5 : vector<2x128xf32>
    %c0_5 = arith.constant 0 : index
    %c1 = arith.constant 1 : index
    %8 = vector.load %arg1[%c0_5, %c1] : memref<2x4xf32, #tpu.memory_space<vmem>>, vector<2x1xf32>
    %c1_6 = arith.constant 1 : index
    %c0_7 = arith.constant 0 : index
    %9 = vector.load %arg2[%c1_6, %c0_7] : memref<4x128xf32, #tpu.memory_space<vmem>>, vector<1x128xf32>
    %10 = vector.broadcast %8 : vector<2x1xf32> to vector<2x128xf32>
    %11 = vector.broadcast %9 : vector<1x128xf32> to vector<2x128xf32>
    %12 = arith.mulf %10, %11 : vector<2x128xf32>
    %13 = arith.addf %7, %12 : vector<2x128xf32>
    %c0_8 = arith.constant 0 : index
    %c2 = arith.constant 2 : index
    %14 = vector.load %arg1[%c0_8, %c2] : memref<2x4xf32, #tpu.memory_space<vmem>>, vector<2x1xf32>
    %c2_9 = arith.constant 2 : index
    %c0_10 = arith.constant 0 : index
    %15 = vector.load %arg2[%c2_9, %c0_10] : memref<4x128xf32, #tpu.memory_space<vmem>>, vector<1x128xf32>
    %16 = vector.broadcast %14 : vector<2x1xf32> to vector<2x128xf32>
    %17 = vector.broadcast %15 : vector<1x128xf32> to vector<2x128xf32>
    %18 = arith.mulf %16, %17 : vector<2x128xf32>
    %19 = arith.addf %13, %18 : vector<2x128xf32>
    %c0_11 = arith.constant 0 : index
    %c3 = arith.constant 3 : index
    %20 = vector.load %arg1[%c0_11, %c3] : memref<2x4xf32, #tpu.memory_space<vmem>>, vector<2x1xf32>
    %c3_12 = arith.constant 3 : index
    %c0_13 = arith.constant 0 : index
    %21 = vector.load %arg2[%c3_12, %c0_13] : memref<4x128xf32, #tpu.memory_space<vmem>>, vector<1x128xf32>
    %22 = vector.broadcast %20 : vector<2x1xf32> to vector<2x128xf32>
    %23 = vector.broadcast %21 : vector<1x128xf32> to vector<2x128xf32>
    %24 = arith.mulf %22, %23 : vector<2x128xf32>
    %25 = arith.addf %19, %24 : vector<2x128xf32>
    %26 = math.sin %25 : vector<2x128xf32>
    %c0_14 = arith.constant 0 : index
    %c0_15 = arith.constant 0 : index
    %27 = vector.load %arg4[%c0_14, %c0_15] : memref<2x128xf32, #tpu.memory_space<vmem>>, vector<2x128xf32>
    tpu.vector_store %arg4[%c0_14, %c0_15], %26 {strides = array<i32>} : memref<2x128xf32, #tpu.memory_space<vmem>>, vector<2x128xf32>,
    return
  }
  func.func @transform_0(%arg0: i32) -> (i32, i32) {
    %c0_i32 = arith.constant 0 : i32
    %c0_i32_0 = arith.constant 0 : i32
    return %arg0, %c0_i32 : i32, i32
  }
  func.func @transform_1(%arg0: i32) -> (i32, i32) {
    %c0_i32 = arith.constant 0 : i32
    %c0_i32_0 = arith.constant 0 : i32
    %c0_i32_1 = arith.constant 0 : i32
    return %c0_i32, %c0_i32_0 : i32, i32
  }
  func.func @transform_2(%arg0: i32) -> (i32, i32) {
    %c0_i32 = arith.constant 0 : i32
    %c0_i32_0 = arith.constant 0 : i32
    %c0_i32_1 = arith.constant 0 : i32
    return %c0_i32, %c0_i32_0 : i32, i32
  }
  func.func @transform_3(%arg0: i32) -> (i32, i32) {
    %c0_i32 = arith.constant 0 : i32
    %c0_i32_0 = arith.constant 0 : i32
    return %arg0, %c0_i32 : i32, i32
  }
}

</mosaic_0001>

<llo_original>
// kernel: tile.7
$region0: #{tile.7}
  %s0 = inlined_call_operand.vmem [shape: f32[4,32], index: 0, kind: input, shape index: {}]
  %s1 = inlined_call_operand.vmem [shape: f32[1,128], index: 1, kind: output, shape index: {}]
  $region1: #{tile.7} parent=0
    #allocation0 [shape = 'u8[4096]{0}', space=vmem, size = 0x1000, scoped, tag = 'scoped mem for output reshape']
    #allocation1 [shape = 'u8[4096]{0}', space=vmem, size = 0x1000, scoped, tag = 'scoped mem for input reshape']
    %s3 = sshll.u32 1, 4
    %s4 = ssub.s32 %s3, 1
    %v5 = vld [vmem:[%s0] sm:%s4]
    %6 = vst [vmem:[#allocation1] sm:%s4] %v5
    %v7 = vld [vmem:[#allocation1] sm:$0x1]
    %vm8 = vcmask 261120
    %9 = vst.msk [vmem:[#allocation0] sm:$0x1] %vm8, %v7
    %s10 = scalar_lea.vmem [#allocation1], 3
    %v11 = vld [vmem:[%s10] sm:$0x1]
    %12 = vrot.lane.b32.xlu0 %v11, 96
    %v13 = vpop.permute.xlu0 %12
    %vm14 = vcmask 1048320
    %15 = vst.msk [vmem:[#allocation0] sm:$0x1] %vm14, %v13
    %s16 = scalar_lea.vmem [#allocation1], 2
    %v17 = vld [vmem:[%s16] sm:$0x1]
    %18 = vrot.lane.b32.xlu0 %v17, 64
    %v19 = vpop.permute.xlu0 %18
    %vm20 = vcmask 785920
    %21 = vst.msk [vmem:[#allocation0] sm:$0x1] %vm20, %v19
    %s22 = scalar_lea.vmem [#allocation1], 1
    %v23 = vld [vmem:[%s22] sm:$0x1]
    %24 = vrot.lane.b32.xlu0 %v23, 32
    %v25 = vpop.permute.xlu0 %24
    %vm26 = vcmask 523520
    %27 = vst.msk [vmem:[#allocation0] sm:$0x1] %vm26, %v25
    %s29 = sshll.u32 1, 1
    %s30 = ssub.s32 %s29, 1
    %v32 = vld [vmem:[#allocation0] sm:%s30]
    %s33 = sshll.u32 1, 1
    %s34 = ssub.s32 %s33, 1
    %35 = vst [vmem:[%s1] sm:%s34] %v32

// kernel: gaussian_fourier_projection.1
$region0: #{gaussian_fourier_projection.1}
  #allocation0 [shape = 'u32[]', space=smem, size = 0x4, offset = 0x4, fixed_abs, tag = 'smem constant byte address 0x4 - core index']
  #allocation1 [shape = 'u32[144,128]{1,0:T(1,128)}', space=vmem, size = 0x12000, scoped, tag = 'internal scratch']
  %s0 = inlined_call_operand.vmem [shape: f32[2,4], index: 0, kind: input, shape index: {}]
  %s1 = inlined_call_operand.vmem [shape: f32[4,128], index: 1, kind: input, shape index: {}]
  %s2 = inlined_call_operand.vmem [shape: f32[1,128], index: 2, kind: input, shape index: {}]
  %s3 = inlined_call_operand.vmem [shape: f32[2,128], index: 3, kind: output, shape index: {}]
  %s4 = sld [smem:[#allocation0]]
  $region22: #{gaussian_fourier_projection.1} parent=0
    _
  %s6 = ssub.s32 1, %s4
  %s7 = scalar_select 0, %s6, %s4
  // Predicated region
  $region2: #{gaussian_fourier_projection.1} parent=0 // pred_check
    _
  $region3: #{gaussian_fourier_projection.1} parent=0 // pred_check_branch
    %9 = sbr.rel (0) target = $region5
  $region4: #{gaussian_fourier_projection.1} parent=0 // pred_region
    _
  $region5: #{gaussian_fourier_projection.1} parent=0 // pred_fallthru
    _
  // Predicated region
  $region6: #{gaussian_fourier_projection.1} parent=0 // pred_check
    _
  $region7: #{gaussian_fourier_projection.1} parent=0 // pred_check_branch
    %11 = sbr.rel (0) target = $region9
  $region8: #{gaussian_fourier_projection.1} parent=0 // pred_region
    _
  $region9: #{gaussian_fourier_projection.1} parent=0 // pred_fallthru
    _
  // Predicated region
  $region10: #{gaussian_fourier_projection.1} parent=0 // pred_check
    _
  $region11: #{gaussian_fourier_projection.1} parent=0 // pred_check_branch
    %13 = sbr.rel (0) target = $region13
  $region12: #{gaussian_fourier_projection.1} parent=0 // pred_region
    _
  $region13: #{gaussian_fourier_projection.1} parent=0 // pred_fallthru
    _
  %v14 = vld [vmem:[%s2] sm:$0x1]
  %v15 = vld [vmem:[%s0] sm:$0x3]
  %v16 = vld [vmem:[%s1] sm:$0x1]
  %18 = vset.pattern.permute.xlu0 0
  %19 = vperm.xlu0 %18, %v15
  %v20 = vpop.permute.xlu0 %19
  %v22 = vlaneseq
  %v23 = vshrl.u32 %v22, 7
  %v24 = vsub.s32 0, %v23
  %v25 = vrot.slane %v16, %v24
  %v26 = vmul.f32 %v20, %v25
  %v28 = vlaneseq
  %v29 = vshrl.u32 %v28, 7
  %v30 = vsub.s32 0, %v29
  %v31 = vrot.slane %v14, %v30
  %v33 = vadd.f32 %v31, %v26
  %v34 = vld [vmem:[%s1 + $0x1] sm:$0x1]
  %35 = vset.pattern.permute.xlu0 1
  %36 = vperm.xlu0 %35, %v15
  %v37 = vpop.permute.xlu0 %36
  %v39 = vlaneseq
  %v40 = vshrl.u32 %v39, 7
  %v41 = vsub.s32 0, %v40
  %v42 = vrot.slane %v34, %v41
  %v43 = vmul.f32 %v37, %v42
  %v44 = vadd.f32 %v33, %v43
  %v45 = vld [vmem:[%s1 + $0x2] sm:$0x1]
  %46 = vset.pattern.permute.xlu0 2
  %47 = vperm.xlu0 %46, %v15
  %v48 = vpop.permute.xlu0 %47
  %v50 = vlaneseq
  %v51 = vshrl.u32 %v50, 7
  %v52 = vsub.s32 0, %v51
  %v53 = vrot.slane %v45, %v52
  %v54 = vmul.f32 %v48, %v53
  %v55 = vadd.f32 %v44, %v54
  %v56 = vld [vmem:[%s1 + $0x3] sm:$0x1]
  %57 = vset.pattern.permute.xlu0 3
  %58 = vperm.xlu0 %57, %v15
  %v59 = vpop.permute.xlu0 %58
  %v61 = vlaneseq
  %v62 = vshrl.u32 %v61, 7
  %v63 = vsub.s32 0, %v62
  %v64 = vrot.slane %v56, %v63
  %v65 = vmul.f32 %v59, %v64
  %v66 = vadd.f32 %v55, %v65
  %v67 = vand.u32 2147483647, %v66
  %vm68 = vcmp.le.f32.partialorder %v67, 0.7853982
  %vm69 = vcmp.lt.s32.totalorder %v66, 0
  %v70 = vand.u32 %v66, 2139095040
  %v71 = vshrl.u32 %v70, 23
  %v72 = vsub.s32 %v71, 127
  %v73 = vand.u32 2147483647, %v66
  %v74 = vand.u32 %v73, 8388607
  %v75 = vor.u32 %v74, 8388608
  %v76 = vsub.s32 0, %v75
  %v77 = vadd.s32 %v72, 1
  %vm78 = vcmp.gt.s32.totalorder %v77, 0
  %v79 = vsel %vm78, %v77, 0
  %v80 = vshrl.u32 %v79, 5
  %v81 = vand.u32 %v79, 31
  %v82 = vsub.s32 32, %v81
  %v83 = vshrl.u32 683565275, %v82
  %v84 = vshll.u32 683565275, %v81
  %v85 = vshrl.u32 2475754826, %v82
  %v86 = vor.u32 %v84, %v85
  %v87 = vshll.u32 2475754826, %v81
  %v88 = vshrl.u32 2131351028, %v82
  %v89 = vor.u32 %v87, %v88
  %v90 = vshll.u32 2131351028, %v81
  %v91 = vshrl.u32 2102212464, %v82
  %v92 = vor.u32 %v90, %v91
  %v93 = vshll.u32 2102212464, %v81
  %v94 = vshrl.u32 920167782, %v82
  %v95 = vor.u32 %v93, %v94
  %v96 = vshll.u32 920167782, %v81
  %v97 = vshrl.u32 1326507024, %v82
  %v98 = vor.u32 %v96, %v97
  %vm99 = vcmp.lt.s32.totalorder %v80, 1
  %vm100 = vcmp.lt.s32.totalorder %v80, 2
  %vm101 = vcmp.lt.s32.totalorder %v80, 3
  %vm102 = vcmp.lt.s32.totalorder %v80, 4
  %v103 = vsel %vm99, %v83, %v86
  %v104 = vsel %vm102, %v92, 2102212464
  %v105 = vsel %vm101, %v89, %v104
  %v106 = vsel %vm100, %v103, %v105
  %v107 = vsel %vm99, %v86, %v89
  %v108 = vsel %vm102, %v95, 920167782
  %v109 = vsel %vm101, %v92, %v108
  %v110 = vsel %vm100, %v107, %v109
  %v111 = vsel %vm99, %v89, %v92
  %v112 = vsel %vm102, %v98, 1326507024
  %v113 = vsel %vm101, %v95, %v112
  %v114 = vsel %vm100, %v111, %v113
  %v115 = vshll.u32 %v75, 8
  %v116 = vmul.u32.u64.compose %v115, %v114
  %v117 = vextract.low.u32 %v116
  %v118 = vextract.high.u32 %v116
  %v119 = vmul.u32.u64.compose %v115, %v110
  %v120 = vextract.low.u32 %v119
  %v121 = vextract.high.u32 %v119
  %v122 = vmul.u32 %v115, %v106
  %v123 = vadd.s32 %v118, %v120
  %vm124 = vc.u32 %v118, %v120
  %v125 = vadd.s32 %v121, 1
  %v126 = vsel %vm124, %v125, %v121
  %v127 = vadd.s32 %v122, %v126
  %v128 = vadd.s32 %v127, 536870912
  %v129 = vshrl.u32 %v128, 30
  %v130 = vshll.u32 %v129, 30
  %v131 = vsub.s32 %v127, %v130
  %vm132 = vcmp.lt.s32.totalorder %v131, 0
  %v133 = vsub.s32 0, %v131
  %v134 = vsel %vm132, %v133, %v131
  %v135 = vclz %v134
  %v136 = vsub.s32 %v135, 2
  %vm137 = vcmp.gt.s32.totalorder 0, %v136
  %v138 = vsel %vm137, 0, %v136
  %v139 = vsub.s32 32, %v138
  %v140 = vshll.u32 %v131, %v138
  %v141 = vshrl.u32 %v123, %v139
  %v142 = vor.u32 %v140, %v141
  %v143 = vsub.s32 4294967266, %v138
  %v144 = vadd.s32 %v143, 127
  %v145 = vshll.u32 %v144, 23
  %v146 = vor.u32 4788187, %v145
  %v147 = vand.u32 2147483647, %v146
  %v149 = vcvt.s32.f32 %v142
  %v150 = vmul.f32 %v149, %v147
  %v151 = vxor.u32 %v150, 2147483648
  %v152 = vsel %vm69, %v151, %v150
  %v153 = vsub.s32 4, %v129
  %v154 = vsel %vm69, %v153, %v129
  %v155 = vsel %vm68, %v66, %v152
  %v156 = vsel %vm68, 0, %v154
  %v157 = vcosq.f32.pop %v155
  %v158 = vsinq.f32.pop %v155
  %vm159 = vweird.f32 %v66
  %v160 = vadd.s32 %v156, 3
  %v161 = vand.u32 %v160, 3
  %vm162 = vcmp.lt.s32.totalorder %v161, 2
  %vm163 = vcmp.eq.s32.totalorder %v161, 0
  %v164 = vxor.u32 %v158, 2147483648
  %v165 = vsel %vm163, %v157, %v164
  %vm166 = vcmp.eq.s32.totalorder %v161, 2
  %v167 = vxor.u32 %v157, 2147483648
  %v168 = vsel %vm166, %v167, %v158
  %v169 = vsel %vm162, %v165, %v168
  %v170 = vsel %vm159, nan, %v169
  %171 = vst [vmem:[%s3] sm:$0x3] %v170
  // Predicated region
  $region14: #{gaussian_fourier_projection.1} parent=0 // pred_check
    _
  $region15: #{gaussian_fourier_projection.1} parent=0 // pred_check_branch
    %173 = sbr.rel (0) target = $region17
  $region16: #{gaussian_fourier_projection.1} parent=0 // pred_region
    _
  $region17: #{gaussian_fourier_projection.1} parent=0 // pred_fallthru
    _
  // Predicated region
  $region18: #{gaussian_fourier_projection.1} parent=0 // pred_check
    _
  $region19: #{gaussian_fourier_projection.1} parent=0 // pred_check_branch
    %175 = sbr.rel (0) target = $region21
  $region20: #{gaussian_fourier_projection.1} parent=0 // pred_region
    _
  $region21: #{gaussian_fourier_projection.1} parent=0 // pred_fallthru
    _

</llo_original>
